<compile_context>
chip_gen: v5e
topology: v5e:2x2
jax: 0.10.0
libtpu: 0.0.40
codegen_flags: <defaults>
</compile_context>

<pallas_src>
import functools

import jax
import jax.numpy as jnp
from jax.experimental import pallas as pl
from jax.experimental.pallas import tpu as pltpu


def _inverted_residual_kernel(x_ref, w1_ref, dwc_ref, w3_ref, b3_ref, o_ref,
                              *, H, W, HWp):
    """One grid step: a whole number of images flattened onto the lane axis.

    x_ref  : (Cin,  Lb)   Lb = imgs_per_step * HWp, lane-dense
    w1_ref : (Ch,   Cin)  1x1 expand conv, BN1 scale pre-folded
    dwc_ref: (Ch,   11)   [:, 0:9] depthwise taps (BN2 scale pre-folded),
                          [:, 9] BN1 shift, [:, 10] BN2 shift
    w3_ref : (Cout, Ch)   1x1 project conv, BN3 scale pre-folded
    b3_ref : (Cout, 1)    BN3 shift
    o_ref  : (Cout, Lb)
    """
    L = x_ref.shape[1]

    w1 = w1_ref[...]
    w3 = w3_ref[...]
    dwc = dwc_ref[...]
    b1 = dwc[:, 9:10]
    b2 = dwc[:, 10:11]
    b3 = b3_ref[...]

    # Per-image boundary masks in flattened (y*W + x) lane space.  Several images
    # share the lane axis, so positions are taken modulo the (padded) image size:
    # rolls never leak pixels across image (or padding) boundaries.
    col = jax.lax.broadcasted_iota(jnp.int32, (1, L), 1)
    pix = col % HWp                      # per-image flattened position
    xw = pix % W                         # x position within a row
    m_left = xw >= 1                     # allows dx = -1
    m_right = xw <= W - 2                # allows dx = +1
    m_up = pix >= W                      # allows dy = -1
    m_down = pix < (H - 1) * W           # allows dy = +1

    x = x_ref[...].astype(jnp.float32)   # (Cin, L)

    # ---- 1x1 expand conv (MXU, BN1 scale folded) + shift + ReLU6 ----
    h = jnp.dot(w1, x, preferred_element_type=jnp.float32)        # (Ch, L)
    h = jnp.clip(h + b1, 0.0, 6.0)

    # ---- 3x3 depthwise conv (stride 1, pad 1) via XLU lane rolls + masks ----
    def shift_and_mask(dy, dx):
        # v[i] = h[i + dy*W + dx] if (y+dy, x+dx) is in-bounds for image i, else 0.
        delta = dy * W + dx
        v = h if delta == 0 else pltpu.roll(h, (-delta) % L, axis=1)
        m = None
        if dy == -1:
            m = m_up
        elif dy == 1:
            m = m_down
        if dx == -1:
            m = m_left if m is None else jnp.logical_and(m, m_left)
        elif dx == 1:
            m = m_right if m is None else jnp.logical_and(m, m_right)
        return v if m is None else jnp.where(m, v, 0.0)

    acc = None
    t = 0
    for dy in (-1, 0, 1):
        for dx in (-1, 0, 1):
            contrib = shift_and_mask(dy, dx) * dwc[:, t:t + 1]
            acc = contrib if acc is None else acc + contrib
            t += 1
    acc = jnp.clip(acc + b2, 0.0, 6.0)

    # ---- 1x1 project conv (MXU, BN3 scale folded) + shift + residual ----
    y = jnp.dot(w3, acc, preferred_element_type=jnp.float32)      # (Cout, L)
    o_ref[...] = (y + b3 + x).astype(o_ref.dtype)                 # use_res_connect


@jax.jit
def inverted_residual(x_nchw, w1, s1, b1, wd, s2, b2, w3, s3, b3):
    """InvertedResidual forward (stride=1, expand_ratio>1, inference BatchNorm).

    x_nchw: (N, Cin, H, W) float32 (PyTorch layout)
    w1: (Cin, Ch)   wd: (3, 3, Ch)   w3: (Ch, Cout)
    s*/b*: folded BatchNorm scale / shift vectors.
    Returns (N, Cout, H, W).
    """
    N, Cin, H, W = x_nchw.shape
    Ch = w1.shape[1]
    Cout = w3.shape[1]
    HW = H * W
    # Residual path requires stride==1 and inp==oup (fail loudly otherwise).
    assert Cin == Cout, "use_res_connect requires inp == oup (and stride == 1)"

    # Lane-density guard: pad each image's flattened H*W axis to a multiple of 128
    # so every vld/vst is unmasked.  Padded lanes never feed valid outputs.
    HWp = ((HW + 127) // 128) * 128

    # Fold BN scales into conv weights; only the additive shifts stay in-kernel.
    w1f = (s1[:, None] * w1.T).astype(jnp.float32)                    # (Ch, Cin)
    w3f = (s3[:, None] * w3.T).astype(jnp.float32)                    # (Cout, Ch)
    wdf = (wd.reshape(9, Ch) * s2[None, :]).T                         # (Ch, 9)
    dwc = jnp.concatenate([wdf, b1[:, None], b2[:, None]], axis=1)    # (Ch, 11)
    dwc = dwc.astype(jnp.float32)
    b3c = b3[:, None].astype(jnp.float32)                             # (Cout, 1)

    # Channel-major with the batch folded into the lane axis: (C, N*HWp).
    x = x_nchw.reshape(N, Cin, HW)
    if HWp != HW:
        x = jnp.pad(x, ((0, 0), (0, 0), (0, HWp - HW)))
    x2 = jnp.transpose(x, (1, 0, 2)).reshape(Cin, N * HWp)

    # Images per grid step: target ~2 MiB of activation (in+out) per block to
    # amortize per-step overhead, keep >=2 grid steps when N>=2 so the
    # ("parallel",) axis can shard across both v7x TensorCores, and stay well
    # within v7x's 64 MiB VMEM with double buffering.  nb must divide N and block
    # boundaries must align to image boundaries (they do: Lb = nb*HWp).
    target_bytes = 2 * 1024 * 1024
    per_img = (Cin + Cout) * HWp * 4
    nb = max(1, min(N, target_bytes // per_img))
    if N >= 2:
        nb = min(nb, (N + 1) // 2)
    while N % nb:
        nb -= 1
    Lb = nb * HWp

    # Explicit VMEM budget hint (only matters once blocks grow; safe for 64 MiB v7x).
    act_block = (Cin + Cout) * Lb * 4            # one input + one output block
    vmem_limit = int(max(32 << 20, min(96 << 20, 4 * act_block + (8 << 20))))

    const_spec = pl.BlockSpec(memory_space=pltpu.MemorySpace.VMEM)  # untiled, resident
    out = pl.pallas_call(
        functools.partial(_inverted_residual_kernel, H=H, W=W, HWp=HWp),
        out_shape=jax.ShapeDtypeStruct((Cout, N * HWp), x_nchw.dtype),
        grid=(N // nb,),
        in_specs=[
            pl.BlockSpec((Cin, Lb), lambda i: (0, i)),   # activations
            const_spec,   # w1  (BN1 scale folded)
            const_spec,   # depthwise taps + BN1/BN2 shifts, packed (Ch, 11)
            const_spec,   # w3  (BN3 scale folded)
            const_spec,   # bn3 shift
        ],
        out_specs=pl.BlockSpec((Cout, Lb), lambda i: (0, i)),
        compiler_params=pltpu.CompilerParams(
            dimension_semantics=("parallel",),
            vmem_limit_bytes=vmem_limit),
    )(x2, w1f, dwc, w3f, b3c)

    out = out.reshape(Cout, N, HWp)[:, :, :HW]
    return jnp.transpose(out, (1, 0, 2)).reshape(N, Cout, H, W)


def _reference_nchw(x, w1, s1, b1, wd, s2, b2, w3, s3, b3):
    """Pure-JAX reference mirroring the PyTorch NCHW graph (inference BN)."""
    Cin, Ch = w1.shape
    Cout = w3.shape[1]
    dn = ("NCHW", "OIHW", "NCHW")

    w1_oihw = jnp.transpose(w1, (1, 0)).reshape(Ch, Cin, 1, 1)
    h = jax.lax.conv_general_dilated(x, w1_oihw, (1, 1), "VALID",
                                     dimension_numbers=dn)
    h = h * s1.reshape(1, Ch, 1, 1) + b1.reshape(1, Ch, 1, 1)
    h = jnp.clip(h, 0.0, 6.0)

    wd_oihw = jnp.transpose(wd, (2, 0, 1)).reshape(Ch, 1, 3, 3)
    h = jax.lax.conv_general_dilated(h, wd_oihw, (1, 1), ((1, 1), (1, 1)),
                                     dimension_numbers=dn,
                                     feature_group_count=Ch)
    h = h * s2.reshape(1, Ch, 1, 1) + b2.reshape(1, Ch, 1, 1)
    h = jnp.clip(h, 0.0, 6.0)

    w3_oihw = jnp.transpose(w3, (1, 0)).reshape(Cout, Ch, 1, 1)
    y = jax.lax.conv_general_dilated(h, w3_oihw, (1, 1), "VALID",
                                     dimension_numbers=dn)
    y = y * s3.reshape(1, Cout, 1, 1) + b3.reshape(1, Cout, 1, 1)
    return x + y


def _fold_bn(gamma, beta, mean, var, eps=1e-5):
    scale = gamma / jnp.sqrt(var + eps)
    shift = beta - mean * scale
    return scale, shift


if __name__ == "__main__":
    # Module config: InvertedResidual(inp=8, oup=8, stride=1, expand_ratio=4)
    N, inp, oup, H, W = 2, 8, 8, 16, 16
    expand_ratio = 4
    hidden = inp * expand_ratio  # 32

    key = jax.random.PRNGKey(0)
    ks = jax.random.split(key, 8)

    # Deterministic synthetic parameters (PyTorch shapes noted in comments).
    w1 = 0.1 * jax.random.normal(ks[0], (inp, hidden), jnp.float32)   # Conv2d(inp,hid,1): (hid,inp,1,1)^T
    wd = 0.1 * jax.random.normal(ks[1], (3, 3, hidden), jnp.float32)  # Conv2d(hid,hid,3,groups=hid): (hid,1,3,3)
    w3 = 0.1 * jax.random.normal(ks[2], (hidden, oup), jnp.float32)   # Conv2d(hid,oup,1): (oup,hid,1,1)^T

    def bn_params(k, c):
        k1, k2, k3, k4 = jax.random.split(k, 4)
        gamma = 0.5 + jax.random.uniform(k1, (c,), jnp.float32)
        beta = 0.1 * jax.random.normal(k2, (c,), jnp.float32)
        mean = 0.1 * jax.random.normal(k3, (c,), jnp.float32)
        var = 0.5 + jax.random.uniform(k4, (c,), jnp.float32)
        return _fold_bn(gamma, beta, mean, var)

    s1, b1 = bn_params(ks[3], hidden)
    s2, b2 = bn_params(ks[4], hidden)
    s3, b3 = bn_params(ks[5], oup)

    x = jax.random.normal(ks[6], (N, inp, H, W), jnp.float32)         # NCHW, like PyTorch

    out = inverted_residual(x, w1, s1, b1, wd, s2, b2, w3, s3, b3)
    out = jax.block_until_ready(out)

    ref = _reference_nchw(x, w1, s1, b1, wd, s2, b2, w3, s3, b3)
    assert out.shape == (N, oup, H, W)
    assert jnp.allclose(out, ref, atol=1e-4, rtol=1e-4), "mismatch vs reference"

    print("KERNEL_OK")
</pallas_src>

<mosaic_0001>
module attributes {stable_mosaic.version = 11 : i64} {
  func.func @_inverted_residual_kernel(%arg0: i32, %arg1: memref<8x256xf32, #tpu.memory_space<vmem>>, %arg2: memref<32x8xf32, #tpu.memory_space<vmem>>, %arg3: memref<32x11xf32, #tpu.memory_space<vmem>>, %arg4: memref<8x32xf32, #tpu.memory_space<vmem>>, %arg5: memref<8x1xf32, #tpu.memory_space<vmem>>, %arg6: memref<8x256xf32, #tpu.memory_space<vmem>>) attributes {dimension_semantics = [#tpu.dimension_semantics<parallel>], iteration_bounds = array<i64: 2>, scalar_prefetch = 0 : i64, scratch_operands = 0 : i64, tpu.core_type = #tpu.core_type<tc>, window_params = [{transform_indices = @transform_0, window_bounds = array<i64: 8, 256>}, {pipeline_mode = #tpu.pipeline_mode<synchronous>, transform_indices = @transform_1, window_bounds = array<i64: 32, 8>}, {pipeline_mode = #tpu.pipeline_mode<synchronous>, transform_indices = @transform_2, window_bounds = array<i64: 32, 11>}, {pipeline_mode = #tpu.pipeline_mode<synchronous>, transform_indices = @transform_3, window_bounds = array<i64: 8, 32>}, {pipeline_mode = #tpu.pipeline_mode<synchronous>, transform_indices = @transform_4, window_bounds = array<i64: 8, 1>}, {transform_indices = @transform_5, window_bounds = array<i64: 8, 256>}]} {
    %c0 = arith.constant 0 : index
    %c0_0 = arith.constant 0 : index
    %0 = vector.load %arg2[%c0, %c0_0] : memref<32x8xf32, #tpu.memory_space<vmem>>, vector<32x8xf32>
    %c0_1 = arith.constant 0 : index
    %c0_2 = arith.constant 0 : index
    %1 = vector.load %arg4[%c0_1, %c0_2] : memref<8x32xf32, #tpu.memory_space<vmem>>, vector<8x32xf32>
    %c0_3 = arith.constant 0 : index
    %c0_4 = arith.constant 0 : index
    %2 = vector.load %arg3[%c0_3, %c0_4] : memref<32x11xf32, #tpu.memory_space<vmem>>, vector<32x11xf32>
    %3 = vector.extract_strided_slice %2 {offsets = [0, 9], sizes = [32, 1], strides = [1, 1]} : vector<32x11xf32> to vector<32x1xf32>
    %4 = vector.extract_strided_slice %2 {offsets = [0, 10], sizes = [32, 1], strides = [1, 1]} : vector<32x11xf32> to vector<32x1xf32>
    %c0_5 = arith.constant 0 : index
    %c0_6 = arith.constant 0 : index
    %5 = vector.load %arg5[%c0_5, %c0_6] : memref<8x1xf32, #tpu.memory_space<vmem>>, vector<8x1xf32>
    %6 = tpu.iota {dimensions = array<i32: 1>} : vector<1x256xi32>
    %c256_i32 = arith.constant 256 : i32
    %c0_i32 = arith.constant 0 : i32
    %7 = arith.cmpi eq, %c256_i32, %c0_i32 : i32
    %c1_i32 = arith.constant 1 : i32
    %8 = arith.select %7, %c1_i32, %c256_i32 : i32
    %9 = vector.broadcast %8 : i32 to vector<1x256xi32>
    %10 = arith.remsi %6, %9 : vector<1x256xi32>
    %c0_i32_7 = arith.constant 0 : i32
    %11 = vector.broadcast %c0_i32_7 : i32 to vector<1x256xi32>
    %12 = arith.cmpi ne, %10, %11 : vector<1x256xi32>
    %c0_i32_8 = arith.constant 0 : i32
    %13 = vector.broadcast %c0_i32_8 : i32 to vector<1x256xi32>
    %14 = arith.cmpi slt, %10, %13 : vector<1x256xi32>
    %c0_i32_9 = arith.constant 0 : i32
    %15 = arith.cmpi slt, %8, %c0_i32_9 : i32
    %16 = vector.broadcast %15 : i1 to vector<1x256xi1>
    %17 = vector.broadcast %16 : vector<1x256xi1> to vector<1x256xi1>
    %18 = arith.xori %14, %17 : vector<1x256xi1>
    %19 = arith.andi %18, %12 : vector<1x256xi1>
    %20 = vector.broadcast %8 : i32 to vector<1x256xi32>
    %21 = arith.addi %10, %20 : vector<1x256xi32>
    %22 = arith.select %19, %21, %10 : vector<1x256xi1>, vector<1x256xi32>
    %c16_i32 = arith.constant 16 : i32
    %c0_i32_10 = arith.constant 0 : i32
    %23 = arith.cmpi eq, %c16_i32, %c0_i32_10 : i32
    %c1_i32_11 = arith.constant 1 : i32
    %24 = arith.select %23, %c1_i32_11, %c16_i32 : i32
    %25 = vector.broadcast %24 : i32 to vector<1x256xi32>
    %26 = arith.remsi %22, %25 : vector<1x256xi32>
    %c0_i32_12 = arith.constant 0 : i32
    %27 = vector.broadcast %c0_i32_12 : i32 to vector<1x256xi32>
    %28 = arith.cmpi ne, %26, %27 : vector<1x256xi32>
    %c0_i32_13 = arith.constant 0 : i32
    %29 = vector.broadcast %c0_i32_13 : i32 to vector<1x256xi32>
    %30 = arith.cmpi slt, %26, %29 : vector<1x256xi32>
    %c0_i32_14 = arith.constant 0 : i32
    %31 = arith.cmpi slt, %24, %c0_i32_14 : i32
    %32 = vector.broadcast %31 : i1 to vector<1x256xi1>
    %33 = vector.broadcast %32 : vector<1x256xi1> to vector<1x256xi1>
    %34 = arith.xori %30, %33 : vector<1x256xi1>
    %35 = arith.andi %34, %28 : vector<1x256xi1>
    %36 = vector.broadcast %24 : i32 to vector<1x256xi32>
    %37 = arith.addi %26, %36 : vector<1x256xi32>
    %38 = arith.select %35, %37, %26 : vector<1x256xi1>, vector<1x256xi32>
    %c1_i32_15 = arith.constant 1 : i32
    %39 = vector.broadcast %c1_i32_15 : i32 to vector<1x256xi32>
    %40 = arith.cmpi sge, %38, %39 : vector<1x256xi32>
    %c14_i32 = arith.constant 14 : i32
    %41 = vector.broadcast %c14_i32 : i32 to vector<1x256xi32>
    %42 = arith.cmpi sle, %38, %41 : vector<1x256xi32>
    %c16_i32_16 = arith.constant 16 : i32
    %43 = vector.broadcast %c16_i32_16 : i32 to vector<1x256xi32>
    %44 = arith.cmpi sge, %22, %43 : vector<1x256xi32>
    %c240_i32 = arith.constant 240 : i32
    %45 = vector.broadcast %c240_i32 : i32 to vector<1x256xi32>
    %46 = arith.cmpi slt, %22, %45 : vector<1x256xi32>
    %c0_17 = arith.constant 0 : index
    %c0_18 = arith.constant 0 : index
    %47 = vector.load %arg1[%c0_17, %c0_18] : memref<8x256xf32, #tpu.memory_space<vmem>>, vector<8x256xf32>
    %cst = arith.constant dense<0.000000e+00> : vector<32x256xf32>
    %48 = tpu.matmul %0, %47, %cst {dimension_numbers = #tpu.dot_dimension_numbers<[1], [0], [0], [1], [0, 0, 1, 1], [], []>} : vector<32x8xf32>, vector<8x256xf32>, vector<32x256xf32> -> vector<32x256xf32>
    %49 = vector.broadcast %3 : vector<32x1xf32> to vector<32x256xf32>
    %50 = arith.addf %48, %49 : vector<32x256xf32>
    %cst_19 = arith.constant 0.000000e+00 : f32
    %cst_20 = arith.constant 6.000000e+00 : f32
    %51 = vector.broadcast %cst_19 : f32 to vector<32x256xf32>
    %52 = arith.maximumf %51, %50 : vector<32x256xf32>
    %53 = vector.broadcast %cst_20 : f32 to vector<32x256xf32>
    %54 = arith.minimumf %53, %52 : vector<32x256xf32>
    %c17_i32 = arith.constant 17 : i32
    %55 = tpu.dynamic_rotate %54 by %c17_i32 dim 1 : vector<32x256xf32>, i32 -> vector<32x256xf32>
    %56 = arith.andi %44, %40 : vector<1x256xi1>
    %cst_21 = arith.constant 0.000000e+00 : f32
    %57 = vector.shape_cast %56 : vector<1x256xi1> to vector<1x256xi1>
    %58 = vector.broadcast %57 : vector<1x256xi1> to vector<32x256xi1>
    %59 = vector.broadcast %cst_21 : f32 to vector<32x256xf32>
    %60 = arith.select %58, %55, %59 : vector<32x256xi1>, vector<32x256xf32>
    %61 = vector.extract_strided_slice %2 {offsets = [0, 0], sizes = [32, 1], strides = [1, 1]} : vector<32x11xf32> to vector<32x1xf32>
    %62 = vector.broadcast %61 : vector<32x1xf32> to vector<32x256xf32>
    %63 = arith.mulf %60, %62 : vector<32x256xf32>
    %c16_i32_22 = arith.constant 16 : i32
    %64 = tpu.dynamic_rotate %54 by %c16_i32_22 dim 1 : vector<32x256xf32>, i32 -> vector<32x256xf32>
    %cst_23 = arith.constant 0.000000e+00 : f32
    %65 = vector.shape_cast %44 : vector<1x256xi1> to vector<1x256xi1>
    %66 = vector.broadcast %65 : vector<1x256xi1> to vector<32x256xi1>
    %67 = vector.broadcast %cst_23 : f32 to vector<32x256xf32>
    %68 = arith.select %66, %64, %67 : vector<32x256xi1>, vector<32x256xf32>
    %69 = vector.extract_strided_slice %2 {offsets = [0, 1], sizes = [32, 1], strides = [1, 1]} : vector<32x11xf32> to vector<32x1xf32>
    %70 = vector.broadcast %69 : vector<32x1xf32> to vector<32x256xf32>
    %71 = arith.mulf %68, %70 : vector<32x256xf32>
    %72 = arith.addf %63, %71 : vector<32x256xf32>
    %c15_i32 = arith.constant 15 : i32
    %73 = tpu.dynamic_rotate %54 by %c15_i32 dim 1 : vector<32x256xf32>, i32 -> vector<32x256xf32>
    %74 = arith.andi %44, %42 : vector<1x256xi1>
    %cst_24 = arith.constant 0.000000e+00 : f32
    %75 = vector.shape_cast %74 : vector<1x256xi1> to vector<1x256xi1>
    %76 = vector.broadcast %75 : vector<1x256xi1> to vector<32x256xi1>
    %77 = vector.broadcast %cst_24 : f32 to vector<32x256xf32>
    %78 = arith.select %76, %73, %77 : vector<32x256xi1>, vector<32x256xf32>
    %79 = vector.extract_strided_slice %2 {offsets = [0, 2], sizes = [32, 1], strides = [1, 1]} : vector<32x11xf32> to vector<32x1xf32>
    %80 = vector.broadcast %79 : vector<32x1xf32> to vector<32x256xf32>
    %81 = arith.mulf %78, %80 : vector<32x256xf32>
    %82 = arith.addf %72, %81 : vector<32x256xf32>
    %c1_i32_25 = arith.constant 1 : i32
    %83 = tpu.dynamic_rotate %54 by %c1_i32_25 dim 1 : vector<32x256xf32>, i32 -> vector<32x256xf32>
    %cst_26 = arith.constant 0.000000e+00 : f32
    %84 = vector.shape_cast %40 : vector<1x256xi1> to vector<1x256xi1>
    %85 = vector.broadcast %84 : vector<1x256xi1> to vector<32x256xi1>
    %86 = vector.broadcast %cst_26 : f32 to vector<32x256xf32>
    %87 = arith.select %85, %83, %86 : vector<32x256xi1>, vector<32x256xf32>
    %88 = vector.extract_strided_slice %2 {offsets = [0, 3], sizes = [32, 1], strides = [1, 1]} : vector<32x11xf32> to vector<32x1xf32>
    %89 = vector.broadcast %88 : vector<32x1xf32> to vector<32x256xf32>
    %90 = arith.mulf %87, %89 : vector<32x256xf32>
    %91 = arith.addf %82, %90 : vector<32x256xf32>
    %92 = vector.extract_strided_slice %2 {offsets = [0, 4], sizes = [32, 1], strides = [1, 1]} : vector<32x11xf32> to vector<32x1xf32>
    %93 = vector.broadcast %92 : vector<32x1xf32> to vector<32x256xf32>
    %94 = arith.mulf %54, %93 : vector<32x256xf32>
    %95 = arith.addf %91, %94 : vector<32x256xf32>
    %c255_i32 = arith.constant 255 : i32
    %96 = tpu.dynamic_rotate %54 by %c255_i32 dim 1 : vector<32x256xf32>, i32 -> vector<32x256xf32>
    %cst_27 = arith.constant 0.000000e+00 : f32
    %97 = vector.shape_cast %42 : vector<1x256xi1> to vector<1x256xi1>
    %98 = vector.broadcast %97 : vector<1x256xi1> to vector<32x256xi1>
    %99 = vector.broadcast %cst_27 : f32 to vector<32x256xf32>
    %100 = arith.select %98, %96, %99 : vector<32x256xi1>, vector<32x256xf32>
    %101 = vector.extract_strided_slice %2 {offsets = [0, 5], sizes = [32, 1], strides = [1, 1]} : vector<32x11xf32> to vector<32x1xf32>
    %102 = vector.broadcast %101 : vector<32x1xf32> to vector<32x256xf32>
    %103 = arith.mulf %100, %102 : vector<32x256xf32>
    %104 = arith.addf %95, %103 : vector<32x256xf32>
    %c241_i32 = arith.constant 241 : i32
    %105 = tpu.dynamic_rotate %54 by %c241_i32 dim 1 : vector<32x256xf32>, i32 -> vector<32x256xf32>
    %106 = arith.andi %46, %40 : vector<1x256xi1>
    %cst_28 = arith.constant 0.000000e+00 : f32
    %107 = vector.shape_cast %106 : vector<1x256xi1> to vector<1x256xi1>
    %108 = vector.broadcast %107 : vector<1x256xi1> to vector<32x256xi1>
    %109 = vector.broadcast %cst_28 : f32 to vector<32x256xf32>
    %110 = arith.select %108, %105, %109 : vector<32x256xi1>, vector<32x256xf32>
    %111 = vector.extract_strided_slice %2 {offsets = [0, 6], sizes = [32, 1], strides = [1, 1]} : vector<32x11xf32> to vector<32x1xf32>
    %112 = vector.broadcast %111 : vector<32x1xf32> to vector<32x256xf32>
    %113 = arith.mulf %110, %112 : vector<32x256xf32>
    %114 = arith.addf %104, %113 : vector<32x256xf32>
    %c240_i32_29 = arith.constant 240 : i32
    %115 = tpu.dynamic_rotate %54 by %c240_i32_29 dim 1 : vector<32x256xf32>, i32 -> vector<32x256xf32>
    %cst_30 = arith.constant 0.000000e+00 : f32
    %116 = vector.shape_cast %46 : vector<1x256xi1> to vector<1x256xi1>
    %117 = vector.broadcast %116 : vector<1x256xi1> to vector<32x256xi1>
    %118 = vector.broadcast %cst_30 : f32 to vector<32x256xf32>
    %119 = arith.select %117, %115, %118 : vector<32x256xi1>, vector<32x256xf32>
    %120 = vector.extract_strided_slice %2 {offsets = [0, 7], sizes = [32, 1], strides = [1, 1]} : vector<32x11xf32> to vector<32x1xf32>
    %121 = vector.broadcast %120 : vector<32x1xf32> to vector<32x256xf32>
    %122 = arith.mulf %119, %121 : vector<32x256xf32>
    %123 = arith.addf %114, %122 : vector<32x256xf32>
    %c239_i32 = arith.constant 239 : i32
    %124 = tpu.dynamic_rotate %54 by %c239_i32 dim 1 : vector<32x256xf32>, i32 -> vector<32x256xf32>
    %125 = arith.andi %46, %42 : vector<1x256xi1>
    %cst_31 = arith.constant 0.000000e+00 : f32
    %126 = vector.shape_cast %125 : vector<1x256xi1> to vector<1x256xi1>
    %127 = vector.broadcast %126 : vector<1x256xi1> to vector<32x256xi1>
    %128 = vector.broadcast %cst_31 : f32 to vector<32x256xf32>
    %129 = arith.select %127, %124, %128 : vector<32x256xi1>, vector<32x256xf32>
    %130 = vector.extract_strided_slice %2 {offsets = [0, 8], sizes = [32, 1], strides = [1, 1]} : vector<32x11xf32> to vector<32x1xf32>
    %131 = vector.broadcast %130 : vector<32x1xf32> to vector<32x256xf32>
    %132 = arith.mulf %129, %131 : vector<32x256xf32>
    %133 = arith.addf %123, %132 : vector<32x256xf32>
    %134 = vector.broadcast %4 : vector<32x1xf32> to vector<32x256xf32>
    %135 = arith.addf %133, %134 : vector<32x256xf32>
    %cst_32 = arith.constant 0.000000e+00 : f32
    %cst_33 = arith.constant 6.000000e+00 : f32
    %136 = vector.broadcast %cst_32 : f32 to vector<32x256xf32>
    %137 = arith.maximumf %136, %135 : vector<32x256xf32>
    %138 = vector.broadcast %cst_33 : f32 to vector<32x256xf32>
    %139 = arith.minimumf %138, %137 : vector<32x256xf32>
    %cst_34 = arith.constant dense<0.000000e+00> : vector<8x256xf32>
    %140 = tpu.matmul %1, %139, %cst_34 {dimension_numbers = #tpu.dot_dimension_numbers<[1], [0], [0], [1], [0, 0, 1, 1], [], []>} : vector<8x32xf32>, vector<32x256xf32>, vector<8x256xf32> -> vector<8x256xf32>
    %141 = vector.broadcast %5 : vector<8x1xf32> to vector<8x256xf32>
    %142 = arith.addf %140, %141 : vector<8x256xf32>
    %143 = arith.addf %142, %47 : vector<8x256xf32>
    %c0_35 = arith.constant 0 : index
    %c0_36 = arith.constant 0 : index
    %144 = vector.load %arg6[%c0_35, %c0_36] : memref<8x256xf32, #tpu.memory_space<vmem>>, vector<8x256xf32>
    tpu.vector_store %arg6[%c0_35, %c0_36], %143 {strides = array<i32>} : memref<8x256xf32, #tpu.memory_space<vmem>>, vector<8x256xf32>,
    return
  }
  func.func @transform_0(%arg0: i32) -> (i32, i32) {
    %c0_i32 = arith.constant 0 : i32
    %c0_i32_0 = arith.constant 0 : i32
    return %c0_i32, %arg0 : i32, i32
  }
  func.func @transform_1(%arg0: i32) -> (i32, i32) {
    %c0_i32 = arith.constant 0 : i32
    %c0_i32_0 = arith.constant 0 : i32
    %c0_i32_1 = arith.constant 0 : i32
    return %c0_i32, %c0_i32_0 : i32, i32
  }
  func.func @transform_2(%arg0: i32) -> (i32, i32) {
    %c0_i32 = arith.constant 0 : i32
    %c0_i32_0 = arith.constant 0 : i32
    %c0_i32_1 = arith.constant 0 : i32
    return %c0_i32, %c0_i32_0 : i32, i32
  }
  func.func @transform_3(%arg0: i32) -> (i32, i32) {
    %c0_i32 = arith.constant 0 : i32
    %c0_i32_0 = arith.constant 0 : i32
    %c0_i32_1 = arith.constant 0 : i32
    return %c0_i32, %c0_i32_0 : i32, i32
  }
  func.func @transform_4(%arg0: i32) -> (i32, i32) {
    %c0_i32 = arith.constant 0 : i32
    %c0_i32_0 = arith.constant 0 : i32
    %c0_i32_1 = arith.constant 0 : i32
    return %c0_i32, %c0_i32_0 : i32, i32
  }
  func.func @transform_5(%arg0: i32) -> (i32, i32) {
    %c0_i32 = arith.constant 0 : i32
    %c0_i32_0 = arith.constant 0 : i32
    return %c0_i32, %arg0 : i32, i32
  }
}

</mosaic_0001>

<llo_original>
// kernel: inverted_residual.1
$region0: #{inverted_residual.1}
  #allocation0 [shape = 'u32[]', space=smem, size = 0x4, offset = 0x4, fixed_abs, tag = 'smem constant byte address 0x4 - core index']
  #allocation1 [shape = 'u32[72,128]{1,0:T(1,128)}', space=vmem, size = 0x9000, scoped, tag = 'internal scratch']
  %s0 = inlined_call_operand.vmem [shape: f32[8,512], index: 0, kind: input, shape index: {}]
  %s1 = inlined_call_operand.vmem [shape: f32[32,8], index: 1, kind: input, shape index: {}]
  %s2 = inlined_call_operand.vmem [shape: f32[32,11], index: 2, kind: input, shape index: {}]
  %s3 = inlined_call_operand.vmem [shape: f32[8,32], index: 3, kind: input, shape index: {}]
  %s4 = inlined_call_operand.vmem [shape: f32[8,1], index: 4, kind: input, shape index: {}]
  %s5 = inlined_call_operand.vmem [shape: f32[8,512], index: 5, kind: output, shape index: {}]
  %s6 = sld [smem:[#allocation0]]
  $region53: #{inverted_residual.1} parent=0
    _
  %s8 = ssub.s32 1, %s6
  %s9 = scalar_select 0, %s8, %s6
  loop: start=0, step=1, limit=4
  $region2: #{inverted_residual.1} parent=0 // loop_pre_header
    _
  $region3: #{inverted_residual.1} parent=0 // loop_header
    %s11 = sphi 0, %s15
    %p12 = scmp.ge.s32.totalorder %s11, 4
    %s21 = sphi 0, %s23
    %s24 = sphi 0, %s21
    %s25 = sphi 0, %s24
    %s41 = sphi 0, %s25
    %s45 = sphi 0, %s45
    %s47 = sphi 0, %s45
    %s48 = sphi 0, %s47
    %s62 = sphi 0, %s48
    %s66 = sphi 0, %s66
    %s68 = sphi 0, %s66
    %s69 = sphi 0, %s68
    %s83 = sphi 0, %s69
    %s87 = sphi 0, %s87
    %s89 = sphi 0, %s87
    %s90 = sphi 0, %s89
    %s104 = sphi 0, %s90
    %s108 = sphi 0, %s108
    %s110 = sphi 0, %s108
    %s111 = sphi 0, %s110
    %s125 = sphi 0, %s111
    %s131 = sphi 0, %s133
    %s134 = sphi 0, %s131
    %s135 = sphi 0, %s134
    %s151 = sphi 0, %s135
  $region4: #{inverted_residual.1} parent=0 // loop_header_branch
    %14 = sbr.rel (%p12) target = $region8
  $region5: #{inverted_residual.1} parent=0 // loop_body
    %s16 = ssub.s32 %s11, 1
    %s17 = ssub.s32 %s11, 2
    %s18 = sadd.s32 %s11, 1
    %s19 = ssub.s32 %s11, %s18
    %p20 = scmp.eq.s32.totalorder %s19, 0
    %s22 = sadd.s32 %s21, 1
    %s23 = scalar_select %p20, %s21, %s22
    %p26 = pneg %p20
    %p27 = scmp.eq.s32.totalorder %s11, 1
    %p28 = por %p26, %p27
    %p29 = scmp.ne.s32.totalorder %s21, %s24
    %p30 = scmp.eq.s32.totalorder %s11, 0
    %p31 = por %p29, %p30
    %p32 = scmp.ne.s32.totalorder %s21, %s24
    %p33 = scmp.eq.s32.totalorder %s16, 1
    %p34 = por %p32, %p33
    %p35 = scmp.ne.s32.totalorder %s24, %s25
    %p36 = scmp.eq.s32.totalorder %s16, 0
    %p37 = por %p35, %p36
    %p38 = scmp.ne.s32.totalorder %s24, %s25
    %p39 = scmp.eq.s32.totalorder %s17, 1
    %p40 = por %p38, %p39
    %p42 = scmp.ne.s32.totalorder %s25, %s41
    %p43 = scmp.eq.s32.totalorder %s17, 0
    %p44 = por %p42, %p43
    %s46 = sadd.s32 %s45, 1
    %p49 = scmp.eq.s32.totalorder %s11, 1
    %p50 = scmp.ne.s32.totalorder %s45, %s47
    %p51 = scmp.eq.s32.totalorder %s11, 0
    %p52 = por %p50, %p51
    %p53 = scmp.ne.s32.totalorder %s45, %s47
    %p54 = scmp.eq.s32.totalorder %s16, 1
    %p55 = por %p53, %p54
    %p56 = scmp.ne.s32.totalorder %s47, %s48
    %p57 = scmp.eq.s32.totalorder %s16, 0
    %p58 = por %p56, %p57
    %p59 = scmp.ne.s32.totalorder %s47, %s48
    %p60 = scmp.eq.s32.totalorder %s17, 1
    %p61 = por %p59, %p60
    %p63 = scmp.ne.s32.totalorder %s48, %s62
    %p64 = scmp.eq.s32.totalorder %s17, 0
    %p65 = por %p63, %p64
    %s67 = sadd.s32 %s66, 1
    %p70 = scmp.eq.s32.totalorder %s11, 1
    %p71 = scmp.ne.s32.totalorder %s66, %s68
    %p72 = scmp.eq.s32.totalorder %s11, 0
    %p73 = por %p71, %p72
    %p74 = scmp.ne.s32.totalorder %s66, %s68
    %p75 = scmp.eq.s32.totalorder %s16, 1
    %p76 = por %p74, %p75
    %p77 = scmp.ne.s32.totalorder %s68, %s69
    %p78 = scmp.eq.s32.totalorder %s16, 0
    %p79 = por %p77, %p78
    %p80 = scmp.ne.s32.totalorder %s68, %s69
    %p81 = scmp.eq.s32.totalorder %s17, 1
    %p82 = por %p80, %p81
    %p84 = scmp.ne.s32.totalorder %s69, %s83
    %p85 = scmp.eq.s32.totalorder %s17, 0
    %p86 = por %p84, %p85
    %s88 = sadd.s32 %s87, 1
    %p91 = scmp.eq.s32.totalorder %s11, 1
    %p92 = scmp.ne.s32.totalorder %s87, %s89
    %p93 = scmp.eq.s32.totalorder %s11, 0
    %p94 = por %p92, %p93
    %p95 = scmp.ne.s32.totalorder %s87, %s89
    %p96 = scmp.eq.s32.totalorder %s16, 1
    %p97 = por %p95, %p96
    %p98 = scmp.ne.s32.totalorder %s89, %s90
    %p99 = scmp.eq.s32.totalorder %s16, 0
    %p100 = por %p98, %p99
    %p101 = scmp.ne.s32.totalorder %s89, %s90
    %p102 = scmp.eq.s32.totalorder %s17, 1
    %p103 = por %p101, %p102
    %p105 = scmp.ne.s32.totalorder %s90, %s104
    %p106 = scmp.eq.s32.totalorder %s17, 0
    %p107 = por %p105, %p106
    %s109 = sadd.s32 %s108, 1
    %p112 = scmp.eq.s32.totalorder %s11, 1
    %p113 = scmp.ne.s32.totalorder %s108, %s110
    %p114 = scmp.eq.s32.totalorder %s11, 0
    %p115 = por %p113, %p114
    %p116 = scmp.ne.s32.totalorder %s108, %s110
    %p117 = scmp.eq.s32.totalorder %s16, 1
    %p118 = por %p116, %p117
    %p119 = scmp.ne.s32.totalorder %s110, %s111
    %p120 = scmp.eq.s32.totalorder %s16, 0
    %p121 = por %p119, %p120
    %p122 = scmp.ne.s32.totalorder %s110, %s111
    %p123 = scmp.eq.s32.totalorder %s17, 1
    %p124 = por %p122, %p123
    %p126 = scmp.ne.s32.totalorder %s111, %s125
    %p127 = scmp.eq.s32.totalorder %s17, 0
    %p128 = por %p126, %p127
    %s129 = ssub.s32 %s11, %s18
    %p130 = scmp.eq.s32.totalorder %s129, 0
    %s132 = sadd.s32 %s131, 1
    %s133 = scalar_select %p130, %s131, %s132
    %p136 = pneg %p130
    %p137 = scmp.eq.s32.totalorder %s11, 1
    %p138 = por %p136, %p137
    %p139 = scmp.ne.s32.totalorder %s131, %s134
    %p140 = scmp.eq.s32.totalorder %s11, 0
    %p141 = por %p139, %p140
    %p142 = scmp.ne.s32.totalorder %s131, %s134
    %p143 = scmp.eq.s32.totalorder %s16, 1
    %p144 = por %p142, %p143
    %p145 = scmp.ne.s32.totalorder %s134, %s135
    %p146 = scmp.eq.s32.totalorder %s16, 0
    %p147 = por %p145, %p146
    %p148 = scmp.ne.s32.totalorder %s134, %s135
    %p149 = scmp.eq.s32.totalorder %s17, 1
    %p150 = por %p148, %p149
    %p152 = scmp.ne.s32.totalorder %s135, %s151
    %p153 = scmp.eq.s32.totalorder %s17, 0
    %p154 = por %p152, %p153
    %p155 = scmp.le.s32.totalorder 1, %s11
    %p156 = scmp.lt.s32.totalorder %s11, 3
    %p157 = pnand %p155, %p156
    %p158 = pneg %p157
    // Predicated region
    $region9: #{inverted_residual.1} parent=5 // pred_check
      _
    $region10: #{inverted_residual.1} parent=5 // pred_check_branch
      %160 = sbr.rel (%p157) target = $region12
    $region11: #{inverted_residual.1} parent=5 // pred_region
      %s161 = ssub.s32 %s11, 1
      // Predicated region
      $region13: #{inverted_residual.1} parent=11 // pred_check
        %p162 = pneg %p58
      $region14: #{inverted_residual.1} parent=11 // pred_check_branch
        %164 = sbr.rel (%p162) target = $region16
      $region15: #{inverted_residual.1} parent=11 // pred_region
        _
      $region16: #{inverted_residual.1} parent=11 // pred_fallthru
        _
      // Predicated region
      $region17: #{inverted_residual.1} parent=11 // pred_check
        %p165 = pneg %p79
      $region18: #{inverted_residual.1} parent=11 // pred_check_branch
        %167 = sbr.rel (%p165) target = $region20
      $region19: #{inverted_residual.1} parent=11 // pred_region
        _
      $region20: #{inverted_residual.1} parent=11 // pred_fallthru
        _
      // Predicated region
      $region21: #{inverted_residual.1} parent=11 // pred_check
        %p168 = pneg %p100
      $region22: #{inverted_residual.1} parent=11 // pred_check_branch
        %170 = sbr.rel (%p168) target = $region24
      $region23: #{inverted_residual.1} parent=11 // pred_region
        _
      $region24: #{inverted_residual.1} parent=11 // pred_fallthru
        _
      // Predicated region
      $region25: #{inverted_residual.1} parent=11 // pred_check
        %p171 = pneg %p121
      $region26: #{inverted_residual.1} parent=11 // pred_check_branch
        %173 = sbr.rel (%p171) target = $region28
      $region27: #{inverted_residual.1} parent=11 // pred_region
        _
      $region28: #{inverted_residual.1} parent=11 // pred_fallthru
        _
    $region12: #{inverted_residual.1} parent=5 // pred_fallthru
      _
    %p174 = scmp.lt.s32.totalorder %s11, 2
    // Predicated region
    $region29: #{inverted_residual.1} parent=5 // pred_check
      %p175 = pneg %p174
    $region30: #{inverted_residual.1} parent=5 // pred_check_branch
      %177 = sbr.rel (%p175) target = $region32
    $region31: #{inverted_residual.1} parent=5 // pred_region
      // Predicated region
      $region33: #{inverted_residual.1} parent=31 // pred_check
        %p178 = pneg %p31
      $region34: #{inverted_residual.1} parent=31 // pred_check_branch
        %180 = sbr.rel (%p178) target = $region36
      $region35: #{inverted_residual.1} parent=31 // pred_region
        %s181 = smul.u32 2, %s11
        %p182 = scmp.lt.s32.totalorder %s181, 3
        %s183 = scalar_select %p182, %s181, 3
        %s184 = smul.addr %s183, 8
        %s185 = scalar_lea.vmem %s0, %s184
        %s186 = smul.u32 2, %s11
      $region36: #{inverted_residual.1} parent=31 // pred_fallthru
        _
    $region32: #{inverted_residual.1} parent=5 // pred_fallthru
      _
    %p187 = scmp.le.s32.totalorder 1, %s11
    %p188 = scmp.lt.s32.totalorder %s11, 3
    %p189 = pnand %p187, %p188
    %p190 = pneg %p189
    // Predicated region
    $region37: #{inverted_residual.1} parent=5 // pred_check
      _
    $region38: #{inverted_residual.1} parent=5 // pred_check_branch
      %192 = sbr.rel (%p189) target = $region40
    $region39: #{inverted_residual.1} parent=5 // pred_region
      %s193 = ssub.s32 %s11, 1
      %s194 = smul.u32 2, %s16
      %p195 = scmp.lt.s32.totalorder %s194, 3
      %s196 = scalar_select %p195, %s194, 3
      %s197 = smul.addr %s196, 8
      %s198 = scalar_lea.vmem %s0, %s197
      %p199 = pneg %p37
      %p200 = pneg %p34
      %p201 = pneg %p58
      %p202 = pneg %p55
      %p203 = pneg %p79
      %p204 = pneg %p76
      %p205 = pneg %p100
      %p206 = pneg %p97
      %p207 = pneg %p121
      %p208 = pneg %p118
      %p209 = pneg %p147
      %p210 = pneg %p144
      %s211 = smul.u32 2, %s16
      %p212 = scmp.lt.s32.totalorder %s211, 3
      %s213 = scalar_select %p212, %s211, 3
      %s214 = smul.addr %s213, 8
      %s215 = scalar_lea.vmem %s5, %s214
      %s216 = smul.u32 2, %s16
      %p217 = scmp.lt.s32.totalorder %s216, 3
      %s218 = scalar_select %p217, %s216, 3
      %s219 = smul.addr %s218, 8
      %s220 = scalar_lea.vmem %s0, %s219
      %s221 = smul.u32 2, %s16
      %s222 = smul.u32 2, %s16
      %p223 = scmp.lt.s32.totalorder %s222, 3
      %s224 = scalar_select %p223, %s222, 3
      %s225 = smul.addr %s224, 8
      %s226 = scalar_lea.vmem %s5, %s225
      %s227 = smul.u32 2, %s16
      %v228 = vld [vmem:[%s1] sm:$0xff]
      %v229 = vld [vmem:[%s1 + $0x8] sm:$0xff]
      %v230 = vld [vmem:[%s1 + $0x10] sm:$0xff]
      %v231 = vld [vmem:[%s1 + $0x18] sm:$0xff]
      %v232 = vld [vmem:[%s3] sm:$0xff]
      %v233 = vld [vmem:[%s2] sm:$0xff]
      %v234 = vld [vmem:[%s2 + $0x8] sm:$0xff]
      %v235 = vld [vmem:[%s2 + $0x10] sm:$0xff]
      %v236 = vld [vmem:[%s2 + $0x18] sm:$0xff]
      %v237 = vld [vmem:[%s4] sm:$0xff]
      %v238 = vlaneseq
      %v239 = vand.u32 %v238, 127
      %v240 = vadd.s32 %v239, 128
      %vm241 = vcmp.lt.s32.totalorder %v239, 0
      %v242 = vsub.s32 0, %v239
      %v243 = vsel %vm241, %v242, %v239
      %v244 = vshrl.u32 %v243, 8
      %v245 = vand.u32 %v243, 255
      %v246 = vsub.s32 0, %v245
      %v247 = vsel %vm241, %v246, %v245
      %vm248 = vcmp.lt.s32.totalorder %v240, 0
      %v249 = vsub.s32 0, %v240
      %v250 = vsel %vm248, %v249, %v240
      %v251 = vshrl.u32 %v250, 8
      %v252 = vand.u32 %v250, 255
      %v253 = vsub.s32 0, %v252
      %v254 = vsel %vm248, %v253, %v252
      %vm255 = vcmp.ne.s32.totalorder %v247, 0
      %vm256 = vcmp.ne.s32.totalorder %v254, 0
      %vm257 = vcmp.lt.s32.totalorder %v247, 0
      %vm258 = vcmp.lt.s32.totalorder %v254, 0
      %vm259 = vmand %vm257, %vm255
      %vm260 = vmand %vm258, %vm256
      %v261 = vadd.s32 %v247, 256
      %v262 = vadd.s32 %v254, 256
      %v263 = vsel %vm259, %v261, %v247
      %v264 = vsel %vm260, %v262, %v254
      %vm265 = vcmp.lt.s32.totalorder %v263, 0
      %v266 = vsub.s32 0, %v263
      %v267 = vsel %vm265, %v266, %v263
      %v268 = vshrl.u32 %v267, 4
      %v269 = vand.u32 %v267, 15
      %v270 = vsub.s32 0, %v269
      %v271 = vsel %vm265, %v270, %v269
      %vm272 = vcmp.lt.s32.totalorder %v264, 0
      %v273 = vsub.s32 0, %v264
      %v274 = vsel %vm272, %v273, %v264
      %v275 = vshrl.u32 %v274, 4
      %v276 = vand.u32 %v274, 15
      %v277 = vsub.s32 0, %v276
      %v278 = vsel %vm272, %v277, %v276
      %vm279 = vcmp.ne.s32.totalorder %v271, 0
      %vm280 = vcmp.ne.s32.totalorder %v278, 0
      %vm281 = vcmp.lt.s32.totalorder %v271, 0
      %vm282 = vcmp.lt.s32.totalorder %v278, 0
      %vm283 = vmand %vm281, %vm279
      %vm284 = vmand %vm282, %vm280
      %v285 = vadd.s32 %v271, 16
      %v286 = vadd.s32 %v278, 16
      %v287 = vsel %vm283, %v285, %v271
      %v288 = vsel %vm284, %v286, %v278
      %vm289 = vcmp.ge.s32.totalorder %v287, 1
      %vm290 = vcmp.ge.s32.totalorder %v288, 1
      %vm291 = vcmp.le.s32.totalorder %v287, 14
      %vm292 = vcmp.le.s32.totalorder %v288, 14
      %vm293 = vcmp.ge.s32.totalorder %v263, 16
      %vm294 = vcmp.ge.s32.totalorder %v264, 16
      %vm295 = vcmp.lt.s32.totalorder %v263, 240
      %vm296 = vcmp.lt.s32.totalorder %v264, 240
      %v297 = vld [vmem:[%s220] sm:$0xff]
      %v298 = vld [vmem:[%s220 + $0x8] sm:$0xff]
      %300 = vset.pattern.permute.xlu0 9
      %301 = vperm.xlu0 %300, %v233
      %v302 = vpop.permute.xlu0 %301
      %305 = vset.pattern.permute.xlu0 9
      %306 = vperm.xlu0 %305, %v234
      %v307 = vpop.permute.xlu0 %306
      %310 = vset.pattern.permute.xlu0 9
      %311 = vperm.xlu0 %310, %v235
      %v312 = vpop.permute.xlu0 %311
      %315 = vset.pattern.permute.xlu0 9
      %316 = vperm.xlu0 %315, %v236
      %v317 = vpop.permute.xlu0 %316
      %vm319 = vcmask 64512
      %v321 = vsel %vm319, %v228, 0
      %v324 = vsel %vm319, %v229, 0
      %v327 = vsel %vm319, %v230, 0
      %v330 = vsel %vm319, %v231, 0
      %332 = vmatpush.msra.mxu0 0.0
      %333 = vmatpush.msra.mxu0 0.0
      %334 = vmatpush.msra.mxu0 0.0
      %335 = vmatpush.msra.mxu0 0.0
      %336 = vmatpush.msra.mxu0 0.0
      %337 = vmatpush.msra.mxu0 0.0
      %338 = vmatpush.msra.mxu0 0.0
      %339 = vmatpush.msra.mxu0 0.0
      %340 = vmatpush.msra.mxu0 0.0
      %341 = vmatpush.msra.mxu0 0.0
      %342 = vmatpush.msra.mxu0 0.0
      %343 = vmatpush.msra.mxu0 0.0
      %344 = vmatpush.msra.mxu0 0.0
      %345 = vmatpush.msra.mxu0 0.0
      %346 = vmatpush.msra.mxu0 0.0
      %347 = vmatpush.msra.mxu0 %v297
      %348 = vmatmul.f32.gmra.mxu0 %v321
      %v349 = vpop.f32.mrf.mxu0
      %v350 = vadd.f32 %v302, %v349
      %351 = vmatmul.f32.gmra.mxu0 %v324
      %v352 = vpop.f32.mrf.mxu0
      %v353 = vadd.f32 %v307, %v352
      %354 = vmatmul.f32.gmra.mxu0 %v327
      %v355 = vpop.f32.mrf.mxu0
      %v356 = vadd.f32 %v312, %v355
      %357 = vmatmul.f32.gmra.mxu0 %v330
      %v358 = vpop.f32.mrf.mxu0
      %v359 = vadd.f32 %v317, %v358
      %360 = vdwg.mxu0
      %361 = vmatpush.msra.mxu0 0.0
      %362 = vmatpush.msra.mxu0 0.0
      %363 = vmatpush.msra.mxu0 0.0
      %364 = vmatpush.msra.mxu0 0.0
      %365 = vmatpush.msra.mxu0 0.0
      %366 = vmatpush.msra.mxu0 0.0
      %367 = vmatpush.msra.mxu0 0.0
      %368 = vmatpush.msra.mxu0 0.0
      %369 = vmatpush.msra.mxu0 0.0
      %370 = vmatpush.msra.mxu0 0.0
      %371 = vmatpush.msra.mxu0 0.0
      %372 = vmatpush.msra.mxu0 0.0
      %373 = vmatpush.msra.mxu0 0.0
      %374 = vmatpush.msra.mxu0 0.0
      %375 = vmatpush.msra.mxu0 0.0
      %376 = vmatpush.msra.mxu0 %v298
      %377 = vmatmul.f32.gmra.mxu0 %v321
      %v378 = vpop.f32.mrf.mxu0
      %v379 = vadd.f32 %v302, %v378
      %380 = vmatmul.f32.gmra.mxu0 %v324
      %v381 = vpop.f32.mrf.mxu0
      %v382 = vadd.f32 %v307, %v381
      %383 = vmatmul.f32.gmra.mxu0 %v327
      %v384 = vpop.f32.mrf.mxu0
      %v385 = vadd.f32 %v312, %v384
      %386 = vmatmul.f32.gmra.mxu0 %v330
      %v387 = vpop.f32.mrf.mxu0
      %v388 = vadd.f32 %v317, %v387
      %389 = vdwg.mxu0
      %v390 = vmax.f32 %v350, 0.0
      %v391 = vmax.f32 %v379, 0.0
      %v392 = vmax.f32 %v353, 0.0
      %v393 = vmax.f32 %v382, 0.0
      %v394 = vmax.f32 %v356, 0.0
      %v395 = vmax.f32 %v385, 0.0
      %v396 = vmax.f32 %v359, 0.0
      %v397 = vmax.f32 %v388, 0.0
      %v398 = vmin.f32 %v390, 6.0
      %v399 = vmin.f32 %v391, 6.0
      %v400 = vmin.f32 %v392, 6.0
      %v401 = vmin.f32 %v393, 6.0
      %v402 = vmin.f32 %v394, 6.0
      %v403 = vmin.f32 %v395, 6.0
      %v404 = vmin.f32 %v396, 6.0
      %v405 = vmin.f32 %v397, 6.0
      %406 = vrot.lane.b32.xlu0 %v398, 17
      %v407 = vpop.permute.xlu0 %406
      %408 = vrot.lane.b32.xlu0 %v400, 17
      %v409 = vpop.permute.xlu0 %408
      %410 = vrot.lane.b32.xlu0 %v402, 17
      %v411 = vpop.permute.xlu0 %410
      %412 = vrot.lane.b32.xlu0 %v404, 17
      %v413 = vpop.permute.xlu0 %412
      %414 = vrot.lane.b32.xlu0 %v399, 17
      %v415 = vpop.permute.xlu0 %414
      %416 = vrot.lane.b32.xlu0 %v401, 17
      %v417 = vpop.permute.xlu0 %416
      %418 = vrot.lane.b32.xlu0 %v403, 17
      %v419 = vpop.permute.xlu0 %418
      %420 = vrot.lane.b32.xlu0 %v405, 17
      %v421 = vpop.permute.xlu0 %420
      %vm422 = vcmp.lt.s32.totalorder %v239, 17
      %v423 = vsel %vm422, %v407, %v415
      %v424 = vsel %vm422, %v409, %v417
      %v425 = vsel %vm422, %v411, %v419
      %v426 = vsel %vm422, %v413, %v421
      %v427 = vsel %vm422, %v415, %v407
      %v428 = vsel %vm422, %v417, %v409
      %v429 = vsel %vm422, %v419, %v411
      %v430 = vsel %vm422, %v421, %v413
      %vm431 = vmand %vm293, %vm289
      %vm432 = vmand %vm294, %vm290
      %v433 = vsel %vm431, 1, 0
      %v434 = vsel %vm432, 1, 0
      %vm435 = vcmp.eq.s32.totalorder %v433, 1
      %vm436 = vcmp.eq.s32.totalorder %v434, 1
      %v437 = vsel %vm435, %v427, 0.0
      %v438 = vsel %vm436, %v423, 0.0
      %v439 = vsel %vm435, %v428, 0.0
      %v440 = vsel %vm436, %v424, 0.0
      %v441 = vsel %vm435, %v429, 0.0
      %v442 = vsel %vm436, %v425, 0.0
      %v443 = vsel %vm435, %v430, 0.0
      %v444 = vsel %vm436, %v426, 0.0
      %445 = vset.pattern.permute.xlu0 0
      %446 = vperm.xlu0 %445, %v233
      %v447 = vpop.permute.xlu0 %446
      %449 = vset.pattern.permute.xlu0 0
      %450 = vperm.xlu0 %449, %v234
      %v451 = vpop.permute.xlu0 %450
      %453 = vset.pattern.permute.xlu0 0
      %454 = vperm.xlu0 %453, %v235
      %v455 = vpop.permute.xlu0 %454
      %457 = vset.pattern.permute.xlu0 0
      %458 = vperm.xlu0 %457, %v236
      %v459 = vpop.permute.xlu0 %458
      %v461 = vmul.f32 %v437, %v447
      %v462 = vmul.f32 %v438, %v447
      %v463 = vmul.f32 %v439, %v451
      %v464 = vmul.f32 %v440, %v451
      %v465 = vmul.f32 %v441, %v455
      %v466 = vmul.f32 %v442, %v455
      %v467 = vmul.f32 %v443, %v459
      %v468 = vmul.f32 %v444, %v459
      %469 = vrot.lane.b32.xlu0 %v398, 16
      %v470 = vpop.permute.xlu0 %469
      %471 = vrot.lane.b32.xlu0 %v400, 16
      %v472 = vpop.permute.xlu0 %471
      %473 = vrot.lane.b32.xlu0 %v402, 16
      %v474 = vpop.permute.xlu0 %473
      %475 = vrot.lane.b32.xlu0 %v404, 16
      %v476 = vpop.permute.xlu0 %475
      %477 = vrot.lane.b32.xlu0 %v399, 16
      %v478 = vpop.permute.xlu0 %477
      %479 = vrot.lane.b32.xlu0 %v401, 16
      %v480 = vpop.permute.xlu0 %479
      %481 = vrot.lane.b32.xlu0 %v403, 16
      %v482 = vpop.permute.xlu0 %481
      %483 = vrot.lane.b32.xlu0 %v405, 16
      %v484 = vpop.permute.xlu0 %483
      %vm485 = vcmp.lt.s32.totalorder %v239, 16
      %v486 = vsel %vm485, %v470, %v478
      %v487 = vsel %vm485, %v472, %v480
      %v488 = vsel %vm485, %v474, %v482
      %v489 = vsel %vm485, %v476, %v484
      %v490 = vsel %vm485, %v478, %v470
      %v491 = vsel %vm485, %v480, %v472
      %v492 = vsel %vm485, %v482, %v474
      %v493 = vsel %vm485, %v484, %v476
      %v494 = vsel %vm293, 1, 0
      %v495 = vsel %vm294, 1, 0
      %vm496 = vcmp.eq.s32.totalorder %v494, 1
      %vm497 = vcmp.eq.s32.totalorder %v495, 1
      %v498 = vsel %vm496, %v490, 0.0
      %v499 = vsel %vm497, %v486, 0.0
      %v500 = vsel %vm496, %v491, 0.0
      %v501 = vsel %vm497, %v487, 0.0
      %v502 = vsel %vm496, %v492, 0.0
      %v503 = vsel %vm497, %v488, 0.0
      %v504 = vsel %vm496, %v493, 0.0
      %v505 = vsel %vm497, %v489, 0.0
      %506 = vset.pattern.permute.xlu0 1
      %507 = vperm.xlu0 %506, %v233
      %v508 = vpop.permute.xlu0 %507
      %510 = vset.pattern.permute.xlu0 1
      %511 = vperm.xlu0 %510, %v234
      %v512 = vpop.permute.xlu0 %511
      %514 = vset.pattern.permute.xlu0 1
      %515 = vperm.xlu0 %514, %v235
      %v516 = vpop.permute.xlu0 %515
      %518 = vset.pattern.permute.xlu0 1
      %519 = vperm.xlu0 %518, %v236
      %v520 = vpop.permute.xlu0 %519
      %v522 = vmul.f32 %v498, %v508
      %v523 = vmul.f32 %v499, %v508
      %v524 = vmul.f32 %v500, %v512
      %v525 = vmul.f32 %v501, %v512
      %v526 = vmul.f32 %v502, %v516
      %v527 = vmul.f32 %v503, %v516
      %v528 = vmul.f32 %v504, %v520
      %v529 = vmul.f32 %v505, %v520
      %v530 = vadd.f32 %v461, %v522
      %v531 = vadd.f32 %v462, %v523
      %v532 = vadd.f32 %v463, %v524
      %v533 = vadd.f32 %v464, %v525
      %v534 = vadd.f32 %v465, %v526
      %v535 = vadd.f32 %v466, %v527
      %v536 = vadd.f32 %v467, %v528
      %v537 = vadd.f32 %v468, %v529
      %538 = vrot.lane.b32.xlu0 %v398, 15
      %v539 = vpop.permute.xlu0 %538
      %540 = vrot.lane.b32.xlu0 %v400, 15
      %v541 = vpop.permute.xlu0 %540
      %542 = vrot.lane.b32.xlu0 %v402, 15
      %v543 = vpop.permute.xlu0 %542
      %544 = vrot.lane.b32.xlu0 %v404, 15
      %v545 = vpop.permute.xlu0 %544
      %546 = vrot.lane.b32.xlu0 %v399, 15
      %v547 = vpop.permute.xlu0 %546
      %548 = vrot.lane.b32.xlu0 %v401, 15
      %v549 = vpop.permute.xlu0 %548
      %550 = vrot.lane.b32.xlu0 %v403, 15
      %v551 = vpop.permute.xlu0 %550
      %552 = vrot.lane.b32.xlu0 %v405, 15
      %v553 = vpop.permute.xlu0 %552
      %vm554 = vcmp.lt.s32.totalorder %v239, 15
      %v555 = vsel %vm554, %v539, %v547
      %v556 = vsel %vm554, %v541, %v549
      %v557 = vsel %vm554, %v543, %v551
      %v558 = vsel %vm554, %v545, %v553
      %v559 = vsel %vm554, %v547, %v539
      %v560 = vsel %vm554, %v549, %v541
      %v561 = vsel %vm554, %v551, %v543
      %v562 = vsel %vm554, %v553, %v545
      %vm563 = vmand %vm293, %vm291
      %vm564 = vmand %vm294, %vm292
      %v565 = vsel %vm563, 1, 0
      %v566 = vsel %vm564, 1, 0
      %vm567 = vcmp.eq.s32.totalorder %v565, 1
      %vm568 = vcmp.eq.s32.totalorder %v566, 1
      %v569 = vsel %vm567, %v559, 0.0
      %v570 = vsel %vm568, %v555, 0.0
      %v571 = vsel %vm567, %v560, 0.0
      %v572 = vsel %vm568, %v556, 0.0
      %v573 = vsel %vm567, %v561, 0.0
      %v574 = vsel %vm568, %v557, 0.0
      %v575 = vsel %vm567, %v562, 0.0
      %v576 = vsel %vm568, %v558, 0.0
      %577 = vset.pattern.permute.xlu0 2
      %578 = vperm.xlu0 %577, %v233
      %v579 = vpop.permute.xlu0 %578
      %581 = vset.pattern.permute.xlu0 2
      %582 = vperm.xlu0 %581, %v234
      %v583 = vpop.permute.xlu0 %582
      %585 = vset.pattern.permute.xlu0 2
      %586 = vperm.xlu0 %585, %v235
      %v587 = vpop.permute.xlu0 %586
      %589 = vset.pattern.permute.xlu0 2
      %590 = vperm.xlu0 %589, %v236
      %v591 = vpop.permute.xlu0 %590
      %v593 = vmul.f32 %v569, %v579
      %v594 = vmul.f32 %v570, %v579
      %v595 = vmul.f32 %v571, %v583
      %v596 = vmul.f32 %v572, %v583
      %v597 = vmul.f32 %v573, %v587
      %v598 = vmul.f32 %v574, %v587
      %v599 = vmul.f32 %v575, %v591
      %v600 = vmul.f32 %v576, %v591
      %v601 = vadd.f32 %v530, %v593
      %v602 = vadd.f32 %v531, %v594
      %v603 = vadd.f32 %v532, %v595
      %v604 = vadd.f32 %v533, %v596
      %v605 = vadd.f32 %v534, %v597
      %v606 = vadd.f32 %v535, %v598
      %v607 = vadd.f32 %v536, %v599
      %v608 = vadd.f32 %v537, %v600
      %609 = vrot.lane.b32.xlu0 %v398, 1
      %v610 = vpop.permute.xlu0 %609
      %611 = vrot.lane.b32.xlu0 %v400, 1
      %v612 = vpop.permute.xlu0 %611
      %613 = vrot.lane.b32.xlu0 %v402, 1
      %v614 = vpop.permute.xlu0 %613
      %615 = vrot.lane.b32.xlu0 %v404, 1
      %v616 = vpop.permute.xlu0 %615
      %617 = vrot.lane.b32.xlu0 %v399, 1
      %v618 = vpop.permute.xlu0 %617
      %619 = vrot.lane.b32.xlu0 %v401, 1
      %v620 = vpop.permute.xlu0 %619
      %621 = vrot.lane.b32.xlu0 %v403, 1
      %v622 = vpop.permute.xlu0 %621
      %623 = vrot.lane.b32.xlu0 %v405, 1
      %v624 = vpop.permute.xlu0 %623
      %vm625 = vcmp.lt.s32.totalorder %v239, 1
      %v626 = vsel %vm625, %v610, %v618
      %v627 = vsel %vm625, %v612, %v620
      %v628 = vsel %vm625, %v614, %v622
      %v629 = vsel %vm625, %v616, %v624
      %v630 = vsel %vm625, %v618, %v610
      %v631 = vsel %vm625, %v620, %v612
      %v632 = vsel %vm625, %v622, %v614
      %v633 = vsel %vm625, %v624, %v616
      %v634 = vsel %vm289, 1, 0
      %v635 = vsel %vm290, 1, 0
      %vm636 = vcmp.eq.s32.totalorder %v634, 1
      %vm637 = vcmp.eq.s32.totalorder %v635, 1
      %v638 = vsel %vm636, %v630, 0.0
      %v639 = vsel %vm637, %v626, 0.0
      %v640 = vsel %vm636, %v631, 0.0
      %v641 = vsel %vm637, %v627, 0.0
      %v642 = vsel %vm636, %v632, 0.0
      %v643 = vsel %vm637, %v628, 0.0
      %v644 = vsel %vm636, %v633, 0.0
      %v645 = vsel %vm637, %v629, 0.0
      %646 = vset.pattern.permute.xlu0 3
      %647 = vperm.xlu0 %646, %v233
      %v648 = vpop.permute.xlu0 %647
      %650 = vset.pattern.permute.xlu0 3
      %651 = vperm.xlu0 %650, %v234
      %v652 = vpop.permute.xlu0 %651
      %654 = vset.pattern.permute.xlu0 3
      %655 = vperm.xlu0 %654, %v235
      %v656 = vpop.permute.xlu0 %655
      %658 = vset.pattern.permute.xlu0 3
      %659 = vperm.xlu0 %658, %v236
      %v660 = vpop.permute.xlu0 %659
      %v662 = vmul.f32 %v638, %v648
      %v663 = vmul.f32 %v639, %v648
      %v664 = vmul.f32 %v640, %v652
      %v665 = vmul.f32 %v641, %v652
      %v666 = vmul.f32 %v642, %v656
      %v667 = vmul.f32 %v643, %v656
      %v668 = vmul.f32 %v644, %v660
      %v669 = vmul.f32 %v645, %v660
      %v670 = vadd.f32 %v601, %v662
      %v671 = vadd.f32 %v602, %v663
      %v672 = vadd.f32 %v603, %v664
      %v673 = vadd.f32 %v604, %v665
      %v674 = vadd.f32 %v605, %v666
      %v675 = vadd.f32 %v606, %v667
      %v676 = vadd.f32 %v607, %v668
      %v677 = vadd.f32 %v608, %v669
      %678 = vset.pattern.permute.xlu0 4
      %679 = vperm.xlu0 %678, %v233
      %v680 = vpop.permute.xlu0 %679
      %682 = vset.pattern.permute.xlu0 4
      %683 = vperm.xlu0 %682, %v234
      %v684 = vpop.permute.xlu0 %683
      %686 = vset.pattern.permute.xlu0 4
      %687 = vperm.xlu0 %686, %v235
      %v688 = vpop.permute.xlu0 %687
      %690 = vset.pattern.permute.xlu0 4
      %691 = vperm.xlu0 %690, %v236
      %v692 = vpop.permute.xlu0 %691
      %v694 = vmul.f32 %v398, %v680
      %v695 = vmul.f32 %v399, %v680
      %v696 = vmul.f32 %v400, %v684
      %v697 = vmul.f32 %v401, %v684
      %v698 = vmul.f32 %v402, %v688
      %v699 = vmul.f32 %v403, %v688
      %v700 = vmul.f32 %v404, %v692
      %v701 = vmul.f32 %v405, %v692
      %v702 = vadd.f32 %v670, %v694
      %v703 = vadd.f32 %v671, %v695
      %v704 = vadd.f32 %v672, %v696
      %v705 = vadd.f32 %v673, %v697
      %v706 = vadd.f32 %v674, %v698
      %v707 = vadd.f32 %v675, %v699
      %v708 = vadd.f32 %v676, %v700
      %v709 = vadd.f32 %v677, %v701
      %710 = vrot.lane.b32.xlu0 %v398, 127
      %v711 = vpop.permute.xlu0 %710
      %712 = vrot.lane.b32.xlu0 %v400, 127
      %v713 = vpop.permute.xlu0 %712
      %714 = vrot.lane.b32.xlu0 %v402, 127
      %v715 = vpop.permute.xlu0 %714
      %716 = vrot.lane.b32.xlu0 %v404, 127
      %v717 = vpop.permute.xlu0 %716
      %718 = vrot.lane.b32.xlu0 %v399, 127
      %v719 = vpop.permute.xlu0 %718
      %720 = vrot.lane.b32.xlu0 %v401, 127
      %v721 = vpop.permute.xlu0 %720
      %722 = vrot.lane.b32.xlu0 %v403, 127
      %v723 = vpop.permute.xlu0 %722
      %724 = vrot.lane.b32.xlu0 %v405, 127
      %v725 = vpop.permute.xlu0 %724
      %vm726 = vcmp.lt.s32.totalorder %v239, 127
      %v727 = vsel %vm726, %v711, %v719
      %v728 = vsel %vm726, %v713, %v721
      %v729 = vsel %vm726, %v715, %v723
      %v730 = vsel %vm726, %v717, %v725
      %v731 = vsel %vm726, %v719, %v711
      %v732 = vsel %vm726, %v721, %v713
      %v733 = vsel %vm726, %v723, %v715
      %v734 = vsel %vm726, %v725, %v717
      %v735 = vsel %vm291, 1, 0
      %v736 = vsel %vm292, 1, 0
      %vm737 = vcmp.eq.s32.totalorder %v735, 1
      %vm738 = vcmp.eq.s32.totalorder %v736, 1
      %v739 = vsel %vm737, %v727, 0.0
      %v740 = vsel %vm738, %v731, 0.0
      %v741 = vsel %vm737, %v728, 0.0
      %v742 = vsel %vm738, %v732, 0.0
      %v743 = vsel %vm737, %v729, 0.0
      %v744 = vsel %vm738, %v733, 0.0
      %v745 = vsel %vm737, %v730, 0.0
      %v746 = vsel %vm738, %v734, 0.0
      %747 = vset.pattern.permute.xlu0 5
      %748 = vperm.xlu0 %747, %v233
      %v749 = vpop.permute.xlu0 %748
      %751 = vset.pattern.permute.xlu0 5
      %752 = vperm.xlu0 %751, %v234
      %v753 = vpop.permute.xlu0 %752
      %755 = vset.pattern.permute.xlu0 5
      %756 = vperm.xlu0 %755, %v235
      %v757 = vpop.permute.xlu0 %756
      %759 = vset.pattern.permute.xlu0 5
      %760 = vperm.xlu0 %759, %v236
      %v761 = vpop.permute.xlu0 %760
      %v763 = vmul.f32 %v739, %v749
      %v764 = vmul.f32 %v740, %v749
      %v765 = vmul.f32 %v741, %v753
      %v766 = vmul.f32 %v742, %v753
      %v767 = vmul.f32 %v743, %v757
      %v768 = vmul.f32 %v744, %v757
      %v769 = vmul.f32 %v745, %v761
      %v770 = vmul.f32 %v746, %v761
      %v771 = vadd.f32 %v702, %v763
      %v772 = vadd.f32 %v703, %v764
      %v773 = vadd.f32 %v704, %v765
      %v774 = vadd.f32 %v705, %v766
      %v775 = vadd.f32 %v706, %v767
      %v776 = vadd.f32 %v707, %v768
      %v777 = vadd.f32 %v708, %v769
      %v778 = vadd.f32 %v709, %v770
      %779 = vrot.lane.b32.xlu0 %v398, 113
      %v780 = vpop.permute.xlu0 %779
      %781 = vrot.lane.b32.xlu0 %v400, 113
      %v782 = vpop.permute.xlu0 %781
      %783 = vrot.lane.b32.xlu0 %v402, 113
      %v784 = vpop.permute.xlu0 %783
      %785 = vrot.lane.b32.xlu0 %v404, 113
      %v786 = vpop.permute.xlu0 %785
      %787 = vrot.lane.b32.xlu0 %v399, 113
      %v788 = vpop.permute.xlu0 %787
      %789 = vrot.lane.b32.xlu0 %v401, 113
      %v790 = vpop.permute.xlu0 %789
      %791 = vrot.lane.b32.xlu0 %v403, 113
      %v792 = vpop.permute.xlu0 %791
      %793 = vrot.lane.b32.xlu0 %v405, 113
      %v794 = vpop.permute.xlu0 %793
      %vm795 = vcmp.lt.s32.totalorder %v239, 113
      %v796 = vsel %vm795, %v780, %v788
      %v797 = vsel %vm795, %v782, %v790
      %v798 = vsel %vm795, %v784, %v792
      %v799 = vsel %vm795, %v786, %v794
      %v800 = vsel %vm795, %v788, %v780
      %v801 = vsel %vm795, %v790, %v782
      %v802 = vsel %vm795, %v792, %v784
      %v803 = vsel %vm795, %v794, %v786
      %vm804 = vmand %vm295, %vm289
      %vm805 = vmand %vm296, %vm290
      %v806 = vsel %vm804, 1, 0
      %v807 = vsel %vm805, 1, 0
      %vm808 = vcmp.eq.s32.totalorder %v806, 1
      %vm809 = vcmp.eq.s32.totalorder %v807, 1
      %v810 = vsel %vm808, %v796, 0.0
      %v811 = vsel %vm809, %v800, 0.0
      %v812 = vsel %vm808, %v797, 0.0
      %v813 = vsel %vm809, %v801, 0.0
      %v814 = vsel %vm808, %v798, 0.0
      %v815 = vsel %vm809, %v802, 0.0
      %v816 = vsel %vm808, %v799, 0.0
      %v817 = vsel %vm809, %v803, 0.0
      %818 = vset.pattern.permute.xlu0 6
      %819 = vperm.xlu0 %818, %v233
      %v820 = vpop.permute.xlu0 %819
      %822 = vset.pattern.permute.xlu0 6
      %823 = vperm.xlu0 %822, %v234
      %v824 = vpop.permute.xlu0 %823
      %826 = vset.pattern.permute.xlu0 6
      %827 = vperm.xlu0 %826, %v235
      %v828 = vpop.permute.xlu0 %827
      %830 = vset.pattern.permute.xlu0 6
      %831 = vperm.xlu0 %830, %v236
      %v832 = vpop.permute.xlu0 %831
      %v834 = vmul.f32 %v810, %v820
      %v835 = vmul.f32 %v811, %v820
      %v836 = vmul.f32 %v812, %v824
      %v837 = vmul.f32 %v813, %v824
      %v838 = vmul.f32 %v814, %v828
      %v839 = vmul.f32 %v815, %v828
      %v840 = vmul.f32 %v816, %v832
      %v841 = vmul.f32 %v817, %v832
      %v842 = vadd.f32 %v771, %v834
      %v843 = vadd.f32 %v772, %v835
      %v844 = vadd.f32 %v773, %v836
      %v845 = vadd.f32 %v774, %v837
      %v846 = vadd.f32 %v775, %v838
      %v847 = vadd.f32 %v776, %v839
      %v848 = vadd.f32 %v777, %v840
      %v849 = vadd.f32 %v778, %v841
      %850 = vrot.lane.b32.xlu0 %v398, 112
      %v851 = vpop.permute.xlu0 %850
      %852 = vrot.lane.b32.xlu0 %v400, 112
      %v853 = vpop.permute.xlu0 %852
      %854 = vrot.lane.b32.xlu0 %v402, 112
      %v855 = vpop.permute.xlu0 %854
      %856 = vrot.lane.b32.xlu0 %v404, 112
      %v857 = vpop.permute.xlu0 %856
      %858 = vrot.lane.b32.xlu0 %v399, 112
      %v859 = vpop.permute.xlu0 %858
      %860 = vrot.lane.b32.xlu0 %v401, 112
      %v861 = vpop.permute.xlu0 %860
      %862 = vrot.lane.b32.xlu0 %v403, 112
      %v863 = vpop.permute.xlu0 %862
      %864 = vrot.lane.b32.xlu0 %v405, 112
      %v865 = vpop.permute.xlu0 %864
      %vm866 = vcmp.lt.s32.totalorder %v239, 112
      %v867 = vsel %vm866, %v851, %v859
      %v868 = vsel %vm866, %v853, %v861
      %v869 = vsel %vm866, %v855, %v863
      %v870 = vsel %vm866, %v857, %v865
      %v871 = vsel %vm866, %v859, %v851
      %v872 = vsel %vm866, %v861, %v853
      %v873 = vsel %vm866, %v863, %v855
      %v874 = vsel %vm866, %v865, %v857
      %v875 = vsel %vm295, 1, 0
      %v876 = vsel %vm296, 1, 0
      %vm877 = vcmp.eq.s32.totalorder %v875, 1
      %vm878 = vcmp.eq.s32.totalorder %v876, 1
      %v879 = vsel %vm877, %v867, 0.0
      %v880 = vsel %vm878, %v871, 0.0
      %v881 = vsel %vm877, %v868, 0.0
      %v882 = vsel %vm878, %v872, 0.0
      %v883 = vsel %vm877, %v869, 0.0
      %v884 = vsel %vm878, %v873, 0.0
      %v885 = vsel %vm877, %v870, 0.0
      %v886 = vsel %vm878, %v874, 0.0
      %887 = vset.pattern.permute.xlu0 7
      %888 = vperm.xlu0 %887, %v233
      %v889 = vpop.permute.xlu0 %888
      %891 = vset.pattern.permute.xlu0 7
      %892 = vperm.xlu0 %891, %v234
      %v893 = vpop.permute.xlu0 %892
      %895 = vset.pattern.permute.xlu0 7
      %896 = vperm.xlu0 %895, %v235
      %v897 = vpop.permute.xlu0 %896
      %899 = vset.pattern.permute.xlu0 7
      %900 = vperm.xlu0 %899, %v236
      %v901 = vpop.permute.xlu0 %900
      %v903 = vmul.f32 %v879, %v889
      %v904 = vmul.f32 %v880, %v889
      %v905 = vmul.f32 %v881, %v893
      %v906 = vmul.f32 %v882, %v893
      %v907 = vmul.f32 %v883, %v897
      %v908 = vmul.f32 %v884, %v897
      %v909 = vmul.f32 %v885, %v901
      %v910 = vmul.f32 %v886, %v901
      %v911 = vadd.f32 %v842, %v903
      %v912 = vadd.f32 %v843, %v904
      %v913 = vadd.f32 %v844, %v905
      %v914 = vadd.f32 %v845, %v906
      %v915 = vadd.f32 %v846, %v907
      %v916 = vadd.f32 %v847, %v908
      %v917 = vadd.f32 %v848, %v909
      %v918 = vadd.f32 %v849, %v910
      %919 = vrot.lane.b32.xlu0 %v398, 111
      %v920 = vpop.permute.xlu0 %919
      %921 = vrot.lane.b32.xlu0 %v400, 111
      %v922 = vpop.permute.xlu0 %921
      %923 = vrot.lane.b32.xlu0 %v402, 111
      %v924 = vpop.permute.xlu0 %923
      %925 = vrot.lane.b32.xlu0 %v404, 111
      %v926 = vpop.permute.xlu0 %925
      %927 = vrot.lane.b32.xlu0 %v399, 111
      %v928 = vpop.permute.xlu0 %927
      %929 = vrot.lane.b32.xlu0 %v401, 111
      %v930 = vpop.permute.xlu0 %929
      %931 = vrot.lane.b32.xlu0 %v403, 111
      %v932 = vpop.permute.xlu0 %931
      %933 = vrot.lane.b32.xlu0 %v405, 111
      %v934 = vpop.permute.xlu0 %933
      %vm935 = vcmp.lt.s32.totalorder %v239, 111
      %v936 = vsel %vm935, %v920, %v928
      %v937 = vsel %vm935, %v922, %v930
      %v938 = vsel %vm935, %v924, %v932
      %v939 = vsel %vm935, %v926, %v934
      %v940 = vsel %vm935, %v928, %v920
      %v941 = vsel %vm935, %v930, %v922
      %v942 = vsel %vm935, %v932, %v924
      %v943 = vsel %vm935, %v934, %v926
      %vm944 = vmand %vm295, %vm291
      %vm945 = vmand %vm296, %vm292
      %v946 = vsel %vm944, 1, 0
      %v947 = vsel %vm945, 1, 0
      %vm948 = vcmp.eq.s32.totalorder %v946, 1
      %vm949 = vcmp.eq.s32.totalorder %v947, 1
      %v950 = vsel %vm948, %v936, 0.0
      %v951 = vsel %vm949, %v940, 0.0
      %v952 = vsel %vm948, %v937, 0.0
      %v953 = vsel %vm949, %v941, 0.0
      %v954 = vsel %vm948, %v938, 0.0
      %v955 = vsel %vm949, %v942, 0.0
      %v956 = vsel %vm948, %v939, 0.0
      %v957 = vsel %vm949, %v943, 0.0
      %958 = vset.pattern.permute.xlu0 8
      %959 = vperm.xlu0 %958, %v233
      %v960 = vpop.permute.xlu0 %959
      %962 = vset.pattern.permute.xlu0 8
      %963 = vperm.xlu0 %962, %v234
      %v964 = vpop.permute.xlu0 %963
      %966 = vset.pattern.permute.xlu0 8
      %967 = vperm.xlu0 %966, %v235
      %v968 = vpop.permute.xlu0 %967
      %970 = vset.pattern.permute.xlu0 8
      %971 = vperm.xlu0 %970, %v236
      %v972 = vpop.permute.xlu0 %971
      %v974 = vmul.f32 %v950, %v960
      %v975 = vmul.f32 %v951, %v960
      %v976 = vmul.f32 %v952, %v964
      %v977 = vmul.f32 %v953, %v964
      %v978 = vmul.f32 %v954, %v968
      %v979 = vmul.f32 %v955, %v968
      %v980 = vmul.f32 %v956, %v972
      %v981 = vmul.f32 %v957, %v972
      %v982 = vadd.f32 %v911, %v974
      %v983 = vadd.f32 %v912, %v975
      %v984 = vadd.f32 %v913, %v976
      %v985 = vadd.f32 %v914, %v977
      %v986 = vadd.f32 %v915, %v978
      %v987 = vadd.f32 %v916, %v979
      %v988 = vadd.f32 %v917, %v980
      %v989 = vadd.f32 %v918, %v981
      %990 = vset.pattern.permute.xlu0 10
      %991 = vperm.xlu0 %990, %v233
      %v992 = vpop.permute.xlu0 %991
      %994 = vset.pattern.permute.xlu0 10
      %995 = vperm.xlu0 %994, %v234
      %v996 = vpop.permute.xlu0 %995
      %998 = vset.pattern.permute.xlu0 10
      %999 = vperm.xlu0 %998, %v235
      %v1000 = vpop.permute.xlu0 %999
      %1002 = vset.pattern.permute.xlu0 10
      %1003 = vperm.xlu0 %1002, %v236
      %v1004 = vpop.permute.xlu0 %1003
      %v1006 = vadd.f32 %v982, %v992
      %v1007 = vadd.f32 %v983, %v992
      %v1008 = vadd.f32 %v984, %v996
      %v1009 = vadd.f32 %v985, %v996
      %v1010 = vadd.f32 %v986, %v1000
      %v1011 = vadd.f32 %v987, %v1000
      %v1012 = vadd.f32 %v988, %v1004
      %v1013 = vadd.f32 %v989, %v1004
      %v1014 = vmax.f32 %v1006, 0.0
      %v1015 = vmax.f32 %v1007, 0.0
      %v1016 = vmax.f32 %v1008, 0.0
      %v1017 = vmax.f32 %v1009, 0.0
      %v1018 = vmax.f32 %v1010, 0.0
      %v1019 = vmax.f32 %v1011, 0.0
      %v1020 = vmax.f32 %v1012, 0.0
      %v1021 = vmax.f32 %v1013, 0.0
      %v1022 = vmin.f32 %v1014, 6.0
      %v1023 = vmin.f32 %v1015, 6.0
      %v1024 = vmin.f32 %v1016, 6.0
      %v1025 = vmin.f32 %v1017, 6.0
      %v1026 = vmin.f32 %v1018, 6.0
      %v1027 = vmin.f32 %v1019, 6.0
      %v1028 = vmin.f32 %v1020, 6.0
      %v1029 = vmin.f32 %v1021, 6.0
      %1031 = vset.pattern.permute.xlu0 0
      %1032 = vperm.xlu0 %1031, %v237
      %v1033 = vpop.permute.xlu0 %1032
      %vm1035 = vcmask 261120
      %v1037 = vsel %vm1035, %v232, 0
      %1039 = vmatpush.msra.mxu0 0.0
      %1040 = vmatpush.msra.mxu0 0.0
      %1041 = vmatpush.msra.mxu0 0.0
      %1042 = vmatpush.msra.mxu0 0.0
      %1043 = vmatpush.msra.mxu0 0.0
      %1044 = vmatpush.msra.mxu0 0.0
      %1045 = vmatpush.msra.mxu0 0.0
      %1046 = vmatpush.msra.mxu0 0.0
      %1047 = vmatpush.msra.mxu0 0.0
      %1048 = vmatpush.msra.mxu0 0.0
      %1049 = vmatpush.msra.mxu0 0.0
      %1050 = vmatpush.msra.mxu0 0.0
      %1051 = vmatpush.msra.mxu0 %v1028
      %1052 = vmatpush.msra.mxu0 %v1026
      %1053 = vmatpush.msra.mxu0 %v1024
      %1054 = vmatpush.msra.mxu0 %v1022
      %1055 = vmatmul.f32.gmra.mxu0 %v1037
      %v1056 = vpop.f32.mrf.mxu0
      %v1057 = vadd.f32 %v1033, %v1056
      %1058 = vdwg.mxu0
      %1059 = vmatpush.msra.mxu0 0.0
      %1060 = vmatpush.msra.mxu0 0.0
      %1061 = vmatpush.msra.mxu0 0.0
      %1062 = vmatpush.msra.mxu0 0.0
      %1063 = vmatpush.msra.mxu0 0.0
      %1064 = vmatpush.msra.mxu0 0.0
      %1065 = vmatpush.msra.mxu0 0.0
      %1066 = vmatpush.msra.mxu0 0.0
      %1067 = vmatpush.msra.mxu0 0.0
      %1068 = vmatpush.msra.mxu0 0.0
      %1069 = vmatpush.msra.mxu0 0.0
      %1070 = vmatpush.msra.mxu0 0.0
      %1071 = vmatpush.msra.mxu0 %v1029
      %1072 = vmatpush.msra.mxu0 %v1027
      %1073 = vmatpush.msra.mxu0 %v1025
      %1074 = vmatpush.msra.mxu0 %v1023
      %1075 = vmatmul.f32.gmra.mxu0 %v1037
      %v1076 = vpop.f32.mrf.mxu0
      %v1077 = vadd.f32 %v1033, %v1076
      %1078 = vdwg.mxu0
      %v1079 = vadd.f32 %v1057, %v297
      %v1080 = vadd.f32 %v1077, %v298
      %1081 = vst [vmem:[%s226] sm:$0xff] %v1079
      %1082 = vst [vmem:[%s226 + $0x8] sm:$0xff] %v1080
      %s1083 = smul.u32 2, %s16
      %p1084 = scmp.lt.s32.totalorder %s1083, 3
      %s1085 = scalar_select %p1084, %s1083, 3
      %s1086 = smul.addr %s1085, 8
      %s1087 = scalar_lea.vmem %s5, %s1086
      // Predicated region
      $region41: #{inverted_residual.1} parent=39 // pred_check
        %p1088 = pneg %p144
      $region42: #{inverted_residual.1} parent=39 // pred_check_branch
        %1090 = sbr.rel (%p1088) target = $region44
      $region43: #{inverted_residual.1} parent=39 // pred_region
        %s1091 = smul.u32 2, %s16
      $region44: #{inverted_residual.1} parent=39 // pred_fallthru
        _
    $region40: #{inverted_residual.1} parent=5 // pred_fallthru
      _
    %p1092 = scmp.le.s32.totalorder 2, %s11
    // Predicated region
    $region45: #{inverted_residual.1} parent=5 // pred_check
      %p1093 = pneg %p1092
    $region46: #{inverted_residual.1} parent=5 // pred_check_branch
      %1095 = sbr.rel (%p1093) target = $region48
    $region47: #{inverted_residual.1} parent=5 // pred_region
      %s1096 = ssub.s32 %s11, 2
      // Predicated region
      $region49: #{inverted_residual.1} parent=47 // pred_check
        %p1097 = pneg %p150
      $region50: #{inverted_residual.1} parent=47 // pred_check_branch
        %1099 = sbr.rel (%p1097) target = $region52
      $region51: #{inverted_residual.1} parent=47 // pred_region
        %s1100 = smul.u32 2, %s17
        %p1101 = scmp.lt.s32.totalorder %s1100, 3
        %s1102 = scalar_select %p1101, %s1100, 3
        %s1103 = smul.addr %s1102, 8
        %s1104 = scalar_lea.vmem %s5, %s1103
      $region52: #{inverted_residual.1} parent=47 // pred_fallthru
        _
    $region48: #{inverted_residual.1} parent=5 // pred_fallthru
      _
  $region6: #{inverted_residual.1} parent=0 // loop_footer
    %s15 = sadd.s32 1, %s11
  $region7: #{inverted_residual.1} parent=0 // loop_footer_branch
    %10 = sbr.rel target = $region3
  $region8: #{inverted_residual.1} parent=0 // loop_exit
    _

</llo_original>
